<compile_context>
chip_gen: v5e
topology: v5e:2x2
jax: 0.10.0
libtpu: 0.0.40
codegen_flags: <defaults>
</compile_context>

<pallas_src>
import jax
import jax.numpy as jnp
from jax.experimental import pallas as pl
from jax.experimental.pallas import tpu as pltpu


def _round_up(v, m):
    return (v + m - 1) // m * m


def _mlp_kernel(x_ref, w1_ref, b1_ref, w2_ref, b2_ref, w3_ref, b3_ref,
                o_ref, h1_ref, h2_ref):
    # fc1 + ReLU  (MXU matmul with f32 accumulation, f32 epilogue)
    h1 = jnp.dot(x_ref[...], w1_ref[...], preferred_element_type=jnp.float32)
    h1 = jnp.maximum(h1 + b1_ref[...], 0.0)
    # dropout1 (ratio=0) -> identity
    # TODO(synk): train-mode dropout via pltpu.prng_seed/prng_random_bits for ratio != 0.
    h1_ref[...] = h1.astype(h1_ref.dtype)          # stage through VMEM scratch

    # fc2 + ReLU
    h2 = jnp.dot(h1_ref[...], w2_ref[...], preferred_element_type=jnp.float32)
    h2 = jnp.maximum(h2 + b2_ref[...], 0.0)
    # dropout2 (ratio=0) -> identity
    h2_ref[...] = h2.astype(h2_ref.dtype)

    # fc3 (no activation)
    out = jnp.dot(h2_ref[...], w3_ref[...], preferred_element_type=jnp.float32)
    out = out + b3_ref[...]
    o_ref[...] = out.astype(o_ref.dtype)


def three_layers_decoder_forward(x, params, *, tile_m=128, compute_dtype=None):
    """Fused forward pass.

    params = (w1, b1, w2, b2, w3, b3); weights are (in_features, out_features),
    biases are (1, out_features).  compute_dtype=jnp.bfloat16 halves weight
    traffic and doubles MXU rate on v6e/v7x (accumulation stays f32)."""
    w1, b1, w2, b2, w3, b3 = params
    orig_dtype = x.dtype
    batch, in_size = x.shape
    fc1_size = w1.shape[1]
    fc2_size = w2.shape[1]
    out_size = w3.shape[1]

    cdt = jnp.dtype(compute_dtype) if compute_dtype is not None else jnp.dtype(orig_dtype)

    # Lane-dense (multiple-of-128) feature widths.
    fc1_p = _round_up(fc1_size, 128)
    fc2_p = _round_up(fc2_size, 128)
    out_p = _round_up(out_size, 128)

    # Balanced batch tiling: pick the number of <=tile_m tiles, then shrink the
    # tile to the smallest multiple of 8 that still covers the batch, so the
    # padded tail is minimal (e.g. batch=200 -> 2 tiles of 104, not 2 of 128).
    n_tiles = max(1, pl.cdiv(batch, tile_m))
    tile_m_eff = _round_up(pl.cdiv(batch, n_tiles), 8)
    batch_p = n_tiles * tile_m_eff
    grid = (n_tiles,)

    def pad2(a, rows, cols, dtype):
        a = jnp.asarray(a)
        return jnp.pad(a, ((0, rows - a.shape[0]), (0, cols - a.shape[1]))).astype(dtype)

    x_p = pad2(x, batch_p, in_size, cdt)
    w1_p = pad2(w1, in_size, fc1_p, cdt)
    w2_p = pad2(w2, fc1_p, fc2_p, cdt)
    w3_p = pad2(w3, fc2_p, out_p, cdt)
    # Keep biases (and the bias+ReLU epilogue) in f32 on every chip generation.
    b1_p = pad2(b1, 1, fc1_p, jnp.float32)
    b2_p = pad2(b2, 1, fc2_p, jnp.float32)
    b3_p = pad2(b3, 1, out_p, jnp.float32)

    def _const_spec(shape, single_buffer):
        # Constant index_map -> block never changes; single-buffer it to save VMEM.
        if single_buffer:
            return pl.BlockSpec(shape, lambda i: (0, 0), pipeline_mode=pl.Buffered(1))
        return pl.BlockSpec(shape, lambda i: (0, 0))

    def _build(single_buffer_weights):
        in_specs = [
            pl.BlockSpec((tile_m_eff, in_size), lambda i: (i, 0)),       # x tile
            _const_spec((in_size, fc1_p), single_buffer_weights),        # w1
            _const_spec((1, fc1_p), single_buffer_weights),              # b1
            _const_spec((fc1_p, fc2_p), single_buffer_weights),          # w2
            _const_spec((1, fc2_p), single_buffer_weights),              # b2
            _const_spec((fc2_p, out_p), single_buffer_weights),          # w3
            _const_spec((1, out_p), single_buffer_weights),              # b3
        ]
        out_spec = pl.BlockSpec((tile_m_eff, out_p), lambda i: (i, 0))

        # VMEM budget (weights x buffer_count + double-buffered x/out tiles +
        # h1/h2 scratch) with 25% headroom, clamped to fit v7x's 64 MiB/TC.
        c_item = jnp.dtype(cdt).itemsize
        o_item = jnp.dtype(orig_dtype).itemsize
        wbuf = 1 if single_buffer_weights else 2
        weight_bytes = (w1_p.size + w2_p.size + w3_p.size) * c_item
        bias_bytes = (b1_p.size + b2_p.size + b3_p.size) * 4
        x_tile_bytes = tile_m_eff * in_size * c_item
        out_tile_bytes = tile_m_eff * out_p * o_item
        scratch_bytes = tile_m_eff * (fc1_p + fc2_p) * c_item
        needed = ((weight_bytes + bias_bytes) * wbuf
                  + 2 * (x_tile_bytes + out_tile_bytes) + scratch_bytes)
        vmem_limit = int(min(max(needed * 5 // 4, 8 << 20), 60 << 20))

        flops = 2 * batch_p * (in_size * fc1_p + fc1_p * fc2_p + fc2_p * out_p)
        bytes_accessed = int(x_p.nbytes + w1_p.nbytes + w2_p.nbytes + w3_p.nbytes
                             + b1_p.nbytes + b2_p.nbytes + b3_p.nbytes
                             + batch_p * out_p * o_item)

        return pl.pallas_call(
            _mlp_kernel,
            out_shape=jax.ShapeDtypeStruct((batch_p, out_p), orig_dtype),
            grid_spec=pltpu.PrefetchScalarGridSpec(
                num_scalar_prefetch=0,
                grid=grid,
                in_specs=in_specs,
                out_specs=out_spec,
                scratch_shapes=[
                    pltpu.VMEM((tile_m_eff, fc1_p), cdt),   # h1 staging
                    pltpu.VMEM((tile_m_eff, fc2_p), cdt),   # h2 staging
                ],
            ),
            compiler_params=pltpu.CompilerParams(
                dimension_semantics=("parallel",),
                vmem_limit_bytes=vmem_limit,
            ),
            cost_estimate=pl.CostEstimate(
                flops=flops, transcendentals=0, bytes_accessed=bytes_accessed),
        )

    args = (x_p, w1_p, b1_p, w2_p, b2_p, w3_p, b3_p)
    try:
        out_full = _build(single_buffer_weights=True)(*args)
    except Exception:
        # Fallback if this JAX build rejects pipeline_mode=pl.Buffered(1).
        out_full = _build(single_buffer_weights=False)(*args)

    if batch_p == batch and out_p == out_size:
        return out_full
    return out_full[:batch, :out_size]


def init_params(key, input_size, fc1_size, fc2_size, output_size, dtype=jnp.float32):
    """nn.Linear-style init (U(-1/sqrt(fan_in), +1/sqrt(fan_in))).
    Weights are stored as (in_features, out_features) = W.T of PyTorch layout."""
    def linear_init(k, fan_in, fan_out):
        kw, kb = jax.random.split(k)
        bound = 1.0 / jnp.sqrt(float(fan_in))
        w = jax.random.uniform(kw, (fan_in, fan_out), dtype, -bound, bound)
        b = jax.random.uniform(kb, (1, fan_out), dtype, -bound, bound)
        return w, b

    k1, k2, k3 = jax.random.split(key, 3)
    w1, b1 = linear_init(k1, input_size, fc1_size)
    w2, b2 = linear_init(k2, fc1_size, fc2_size)
    w3, b3 = linear_init(k3, fc2_size, output_size)
    return (w1, b1, w2, b2, w3, b3)


def reference_forward(x, params):
    w1, b1, w2, b2, w3, b3 = params
    h = jnp.maximum(x @ w1 + b1, 0.0)
    h = jnp.maximum(h @ w2 + b2, 0.0)
    return h @ w3 + b3


if __name__ == "__main__":
    # Small shapes consistent with the module's forward: x is (batch, input_size).
    # Chosen to exercise batch padding (20 -> 24) and feature padding
    # (64 -> 128, 96 -> 128, 10 -> 128).
    batch, input_size = 20, 48
    fc1_size, fc2_size, output_size = 64, 96, 10

    key = jax.random.PRNGKey(0)
    kx, kp = jax.random.split(key)
    x = jax.random.normal(kx, (batch, input_size), jnp.float32)
    params = init_params(kp, input_size, fc1_size, fc2_size, output_size)

    out = three_layers_decoder_forward(x, params)
    out = jax.block_until_ready(out)

    ref = reference_forward(x, params)
    assert out.shape == (batch, output_size)
    assert jnp.allclose(out, ref, atol=1e-5, rtol=1e-5), "mismatch vs reference"

    print("KERNEL_OK")
</pallas_src>

<mosaic_0001>
module attributes {stable_mosaic.version = 11 : i64} {
  func.func @_mlp_kernel(%arg0: i32, %arg1: memref<24x48xf32, #tpu.memory_space<vmem>>, %arg2: memref<48x128xf32, #tpu.memory_space<vmem>>, %arg3: memref<1x128xf32, #tpu.memory_space<vmem>>, %arg4: memref<128x128xf32, #tpu.memory_space<vmem>>, %arg5: memref<1x128xf32, #tpu.memory_space<vmem>>, %arg6: memref<128x128xf32, #tpu.memory_space<vmem>>, %arg7: memref<1x128xf32, #tpu.memory_space<vmem>>, %arg8: memref<24x128xf32, #tpu.memory_space<vmem>>, %arg9: memref<24x128xf32, #tpu.memory_space<vmem>>, %arg10: memref<24x128xf32, #tpu.memory_space<vmem>>) attributes {dimension_semantics = [#tpu.dimension_semantics<parallel>], iteration_bounds = array<i64: 1>, scalar_prefetch = 0 : i64, scratch_operands = 2 : i64, tpu.core_type = #tpu.core_type<tc>, window_params = [{transform_indices = @transform_0, window_bounds = array<i64: 24, 48>}, {pipeline_mode = #tpu.pipeline_mode<synchronous>, transform_indices = @transform_1, window_bounds = array<i64: 48, 128>}, {pipeline_mode = #tpu.pipeline_mode<synchronous>, transform_indices = @transform_2, window_bounds = array<i64: 1, 128>}, {pipeline_mode = #tpu.pipeline_mode<synchronous>, transform_indices = @transform_3, window_bounds = array<i64: 128, 128>}, {pipeline_mode = #tpu.pipeline_mode<synchronous>, transform_indices = @transform_4, window_bounds = array<i64: 1, 128>}, {pipeline_mode = #tpu.pipeline_mode<synchronous>, transform_indices = @transform_5, window_bounds = array<i64: 128, 128>}, {pipeline_mode = #tpu.pipeline_mode<synchronous>, transform_indices = @transform_6, window_bounds = array<i64: 1, 128>}, {transform_indices = @transform_7, window_bounds = array<i64: 24, 128>}]} {
    %c0 = arith.constant 0 : index
    %c0_0 = arith.constant 0 : index
    %0 = vector.load %arg1[%c0, %c0_0] : memref<24x48xf32, #tpu.memory_space<vmem>>, vector<24x48xf32>
    %c0_1 = arith.constant 0 : index
    %c0_2 = arith.constant 0 : index
    %1 = vector.load %arg2[%c0_1, %c0_2] : memref<48x128xf32, #tpu.memory_space<vmem>>, vector<48x128xf32>
    %cst = arith.constant dense<0.000000e+00> : vector<24x128xf32>
    %2 = tpu.matmul %0, %1, %cst {dimension_numbers = #tpu.dot_dimension_numbers<[1], [0], [0], [1], [0, 0, 1, 1], [], []>} : vector<24x48xf32>, vector<48x128xf32>, vector<24x128xf32> -> vector<24x128xf32>
    %c0_3 = arith.constant 0 : index
    %c0_4 = arith.constant 0 : index
    %3 = vector.load %arg3[%c0_3, %c0_4] : memref<1x128xf32, #tpu.memory_space<vmem>>, vector<1x128xf32>
    %4 = vector.broadcast %3 : vector<1x128xf32> to vector<24x128xf32>
    %5 = arith.addf %2, %4 : vector<24x128xf32>
    %cst_5 = arith.constant 0.000000e+00 : f32
    %6 = vector.broadcast %cst_5 : f32 to vector<24x128xf32>
    %7 = arith.maximumf %5, %6 : vector<24x128xf32>
    %c0_6 = arith.constant 0 : index
    %c0_7 = arith.constant 0 : index
    %8 = vector.load %arg9[%c0_6, %c0_7] : memref<24x128xf32, #tpu.memory_space<vmem>>, vector<24x128xf32>
    tpu.vector_store %arg9[%c0_6, %c0_7], %7 {strides = array<i32>} : memref<24x128xf32, #tpu.memory_space<vmem>>, vector<24x128xf32>,
    %c0_8 = arith.constant 0 : index
    %c0_9 = arith.constant 0 : index
    %9 = vector.load %arg9[%c0_8, %c0_9] : memref<24x128xf32, #tpu.memory_space<vmem>>, vector<24x128xf32>
    %c0_10 = arith.constant 0 : index
    %c0_11 = arith.constant 0 : index
    %10 = vector.load %arg4[%c0_10, %c0_11] : memref<128x128xf32, #tpu.memory_space<vmem>>, vector<128x128xf32>
    %cst_12 = arith.constant dense<0.000000e+00> : vector<24x128xf32>
    %11 = tpu.matmul %9, %10, %cst_12 {dimension_numbers = #tpu.dot_dimension_numbers<[1], [0], [0], [1], [0, 0, 1, 1], [], []>} : vector<24x128xf32>, vector<128x128xf32>, vector<24x128xf32> -> vector<24x128xf32>
    %c0_13 = arith.constant 0 : index
    %c0_14 = arith.constant 0 : index
    %12 = vector.load %arg5[%c0_13, %c0_14] : memref<1x128xf32, #tpu.memory_space<vmem>>, vector<1x128xf32>
    %13 = vector.broadcast %12 : vector<1x128xf32> to vector<24x128xf32>
    %14 = arith.addf %11, %13 : vector<24x128xf32>
    %cst_15 = arith.constant 0.000000e+00 : f32
    %15 = vector.broadcast %cst_15 : f32 to vector<24x128xf32>
    %16 = arith.maximumf %14, %15 : vector<24x128xf32>
    %c0_16 = arith.constant 0 : index
    %c0_17 = arith.constant 0 : index
    %17 = vector.load %arg10[%c0_16, %c0_17] : memref<24x128xf32, #tpu.memory_space<vmem>>, vector<24x128xf32>
    tpu.vector_store %arg10[%c0_16, %c0_17], %16 {strides = array<i32>} : memref<24x128xf32, #tpu.memory_space<vmem>>, vector<24x128xf32>,
    %c0_18 = arith.constant 0 : index
    %c0_19 = arith.constant 0 : index
    %18 = vector.load %arg10[%c0_18, %c0_19] : memref<24x128xf32, #tpu.memory_space<vmem>>, vector<24x128xf32>
    %c0_20 = arith.constant 0 : index
    %c0_21 = arith.constant 0 : index
    %19 = vector.load %arg6[%c0_20, %c0_21] : memref<128x128xf32, #tpu.memory_space<vmem>>, vector<128x128xf32>
    %cst_22 = arith.constant dense<0.000000e+00> : vector<24x128xf32>
    %20 = tpu.matmul %18, %19, %cst_22 {dimension_numbers = #tpu.dot_dimension_numbers<[1], [0], [0], [1], [0, 0, 1, 1], [], []>} : vector<24x128xf32>, vector<128x128xf32>, vector<24x128xf32> -> vector<24x128xf32>
    %c0_23 = arith.constant 0 : index
    %c0_24 = arith.constant 0 : index
    %21 = vector.load %arg7[%c0_23, %c0_24] : memref<1x128xf32, #tpu.memory_space<vmem>>, vector<1x128xf32>
    %22 = vector.broadcast %21 : vector<1x128xf32> to vector<24x128xf32>
    %23 = arith.addf %20, %22 : vector<24x128xf32>
    %c0_25 = arith.constant 0 : index
    %c0_26 = arith.constant 0 : index
    %24 = vector.load %arg8[%c0_25, %c0_26] : memref<24x128xf32, #tpu.memory_space<vmem>>, vector<24x128xf32>
    tpu.vector_store %arg8[%c0_25, %c0_26], %23 {strides = array<i32>} : memref<24x128xf32, #tpu.memory_space<vmem>>, vector<24x128xf32>,
    return
  }
  func.func @transform_0(%arg0: i32) -> (i32, i32) {
    %c0_i32 = arith.constant 0 : i32
    %c0_i32_0 = arith.constant 0 : i32
    return %arg0, %c0_i32 : i32, i32
  }
  func.func @transform_1(%arg0: i32) -> (i32, i32) {
    %c0_i32 = arith.constant 0 : i32
    %c0_i32_0 = arith.constant 0 : i32
    %c0_i32_1 = arith.constant 0 : i32
    return %c0_i32, %c0_i32_0 : i32, i32
  }
  func.func @transform_2(%arg0: i32) -> (i32, i32) {
    %c0_i32 = arith.constant 0 : i32
    %c0_i32_0 = arith.constant 0 : i32
    %c0_i32_1 = arith.constant 0 : i32
    return %c0_i32, %c0_i32_0 : i32, i32
  }
  func.func @transform_3(%arg0: i32) -> (i32, i32) {
    %c0_i32 = arith.constant 0 : i32
    %c0_i32_0 = arith.constant 0 : i32
    %c0_i32_1 = arith.constant 0 : i32
    return %c0_i32, %c0_i32_0 : i32, i32
  }
  func.func @transform_4(%arg0: i32) -> (i32, i32) {
    %c0_i32 = arith.constant 0 : i32
    %c0_i32_0 = arith.constant 0 : i32
    %c0_i32_1 = arith.constant 0 : i32
    return %c0_i32, %c0_i32_0 : i32, i32
  }
  func.func @transform_5(%arg0: i32) -> (i32, i32) {
    %c0_i32 = arith.constant 0 : i32
    %c0_i32_0 = arith.constant 0 : i32
    %c0_i32_1 = arith.constant 0 : i32
    return %c0_i32, %c0_i32_0 : i32, i32
  }
  func.func @transform_6(%arg0: i32) -> (i32, i32) {
    %c0_i32 = arith.constant 0 : i32
    %c0_i32_0 = arith.constant 0 : i32
    %c0_i32_1 = arith.constant 0 : i32
    return %c0_i32, %c0_i32_0 : i32, i32
  }
  func.func @transform_7(%arg0: i32) -> (i32, i32) {
    %c0_i32 = arith.constant 0 : i32
    %c0_i32_0 = arith.constant 0 : i32
    return %arg0, %c0_i32 : i32, i32
  }
}

module attributes {stable_mosaic.version = 11 : i64} {
  func.func @_mlp_kernel(%arg0: i32, %arg1: memref<24x48xf32, #tpu.memory_space<vmem>>, %arg2: memref<48x128xf32, #tpu.memory_space<vmem>>, %arg3: memref<1x128xf32, #tpu.memory_space<vmem>>, %arg4: memref<128x128xf32, #tpu.memory_space<vmem>>, %arg5: memref<1x128xf32, #tpu.memory_space<vmem>>, %arg6: memref<128x128xf32, #tpu.memory_space<vmem>>, %arg7: memref<1x128xf32, #tpu.memory_space<vmem>>, %arg8: memref<24x128xf32, #tpu.memory_space<vmem>>, %arg9: memref<24x128xf32, #tpu.memory_space<vmem>>, %arg10: memref<24x128xf32, #tpu.memory_space<vmem>>) attributes {dimension_semantics = [#tpu.dimension_semantics<parallel>], iteration_bounds = array<i64: 1>, scalar_prefetch = 0 : i64, scratch_operands = 2 : i64, tpu.core_type = #tpu.core_type<tc>, window_params = [{transform_indices = @transform_0, window_bounds = array<i64: 24, 48>}, {pipeline_mode = #tpu.pipeline_mode<synchronous>, transform_indices = @transform_1, window_bounds = array<i64: 48, 128>}, {pipeline_mode = #tpu.pipeline_mode<synchronous>, transform_indices = @transform_2, window_bounds = array<i64: 1, 128>}, {pipeline_mode = #tpu.pipeline_mode<synchronous>, transform_indices = @transform_3, window_bounds = array<i64: 128, 128>}, {pipeline_mode = #tpu.pipeline_mode<synchronous>, transform_indices = @transform_4, window_bounds = array<i64: 1, 128>}, {pipeline_mode = #tpu.pipeline_mode<synchronous>, transform_indices = @transform_5, window_bounds = array<i64: 128, 128>}, {pipeline_mode = #tpu.pipeline_mode<synchronous>, transform_indices = @transform_6, window_bounds = array<i64: 1, 128>}, {transform_indices = @transform_7, window_bounds = array<i64: 24, 128>}]} {
    %c0 = arith.constant 0 : index
    %c0_0 = arith.constant 0 : index
    %0 = vector.load %arg1[%c0, %c0_0] : memref<24x48xf32, #tpu.memory_space<vmem>>, vector<24x48xf32>
    %c0_1 = arith.constant 0 : index
    %c0_2 = arith.constant 0 : index
    %1 = vector.load %arg2[%c0_1, %c0_2] : memref<48x128xf32, #tpu.memory_space<vmem>>, vector<48x128xf32>
    %cst = arith.constant dense<0.000000e+00> : vector<24x128xf32>
    %2 = tpu.matmul %0, %1, %cst {dimension_numbers = #tpu.dot_dimension_numbers<[1], [0], [0], [1], [0, 0, 1, 1], [], []>} : vector<24x48xf32>, vector<48x128xf32>, vector<24x128xf32> -> vector<24x128xf32>
    %c0_3 = arith.constant 0 : index
    %c0_4 = arith.constant 0 : index
    %3 = vector.load %arg3[%c0_3, %c0_4] : memref<1x128xf32, #tpu.memory_space<vmem>>, vector<1x128xf32>
    %4 = vector.broadcast %3 : vector<1x128xf32> to vector<24x128xf32>
    %5 = arith.addf %2, %4 : vector<24x128xf32>
    %cst_5 = arith.constant 0.000000e+00 : f32
    %6 = vector.broadcast %cst_5 : f32 to vector<24x128xf32>
    %7 = arith.maximumf %5, %6 : vector<24x128xf32>
    %c0_6 = arith.constant 0 : index
    %c0_7 = arith.constant 0 : index
    %8 = vector.load %arg9[%c0_6, %c0_7] : memref<24x128xf32, #tpu.memory_space<vmem>>, vector<24x128xf32>
    tpu.vector_store %arg9[%c0_6, %c0_7], %7 {strides = array<i32>} : memref<24x128xf32, #tpu.memory_space<vmem>>, vector<24x128xf32>,
    %c0_8 = arith.constant 0 : index
    %c0_9 = arith.constant 0 : index
    %9 = vector.load %arg9[%c0_8, %c0_9] : memref<24x128xf32, #tpu.memory_space<vmem>>, vector<24x128xf32>
    %c0_10 = arith.constant 0 : index
    %c0_11 = arith.constant 0 : index
    %10 = vector.load %arg4[%c0_10, %c0_11] : memref<128x128xf32, #tpu.memory_space<vmem>>, vector<128x128xf32>
    %cst_12 = arith.constant dense<0.000000e+00> : vector<24x128xf32>
    %11 = tpu.matmul %9, %10, %cst_12 {dimension_numbers = #tpu.dot_dimension_numbers<[1], [0], [0], [1], [0, 0, 1, 1], [], []>} : vector<24x128xf32>, vector<128x128xf32>, vector<24x128xf32> -> vector<24x128xf32>
    %c0_13 = arith.constant 0 : index
    %c0_14 = arith.constant 0 : index
    %12 = vector.load %arg5[%c0_13, %c0_14] : memref<1x128xf32, #tpu.memory_space<vmem>>, vector<1x128xf32>
    %13 = vector.broadcast %12 : vector<1x128xf32> to vector<24x128xf32>
    %14 = arith.addf %11, %13 : vector<24x128xf32>
    %cst_15 = arith.constant 0.000000e+00 : f32
    %15 = vector.broadcast %cst_15 : f32 to vector<24x128xf32>
    %16 = arith.maximumf %14, %15 : vector<24x128xf32>
    %c0_16 = arith.constant 0 : index
    %c0_17 = arith.constant 0 : index
    %17 = vector.load %arg10[%c0_16, %c0_17] : memref<24x128xf32, #tpu.memory_space<vmem>>, vector<24x128xf32>
    tpu.vector_store %arg10[%c0_16, %c0_17], %16 {strides = array<i32>} : memref<24x128xf32, #tpu.memory_space<vmem>>, vector<24x128xf32>,
    %c0_18 = arith.constant 0 : index
    %c0_19 = arith.constant 0 : index
    %18 = vector.load %arg10[%c0_18, %c0_19] : memref<24x128xf32, #tpu.memory_space<vmem>>, vector<24x128xf32>
    %c0_20 = arith.constant 0 : index
    %c0_21 = arith.constant 0 : index
    %19 = vector.load %arg6[%c0_20, %c0_21] : memref<128x128xf32, #tpu.memory_space<vmem>>, vector<128x128xf32>
    %cst_22 = arith.constant dense<0.000000e+00> : vector<24x128xf32>
    %20 = tpu.matmul %18, %19, %cst_22 {dimension_numbers = #tpu.dot_dimension_numbers<[1], [0], [0], [1], [0, 0, 1, 1], [], []>} : vector<24x128xf32>, vector<128x128xf32>, vector<24x128xf32> -> vector<24x128xf32>
    %c0_23 = arith.constant 0 : index
    %c0_24 = arith.constant 0 : index
    %21 = vector.load %arg7[%c0_23, %c0_24] : memref<1x128xf32, #tpu.memory_space<vmem>>, vector<1x128xf32>
    %22 = vector.broadcast %21 : vector<1x128xf32> to vector<24x128xf32>
    %23 = arith.addf %20, %22 : vector<24x128xf32>
    %c0_25 = arith.constant 0 : index
    %c0_26 = arith.constant 0 : index
    %24 = vector.load %arg8[%c0_25, %c0_26] : memref<24x128xf32, #tpu.memory_space<vmem>>, vector<24x128xf32>
    tpu.vector_store %arg8[%c0_25, %c0_26], %23 {strides = array<i32>} : memref<24x128xf32, #tpu.memory_space<vmem>>, vector<24x128xf32>,
    return
  }
  func.func @transform_0(%arg0: i32) -> (i32, i32) {
    %c0_i32 = arith.constant 0 : i32
    %c0_i32_0 = arith.constant 0 : i32
    return %arg0, %c0_i32 : i32, i32
  }
  func.func @transform_1(%arg0: i32) -> (i32, i32) {
    %c0_i32 = arith.constant 0 : i32
    %c0_i32_0 = arith.constant 0 : i32
    %c0_i32_1 = arith.constant 0 : i32
    return %c0_i32, %c0_i32_0 : i32, i32
  }
  func.func @transform_2(%arg0: i32) -> (i32, i32) {
    %c0_i32 = arith.constant 0 : i32
    %c0_i32_0 = arith.constant 0 : i32
    %c0_i32_1 = arith.constant 0 : i32
    return %c0_i32, %c0_i32_0 : i32, i32
  }
  func.func @transform_3(%arg0: i32) -> (i32, i32) {
    %c0_i32 = arith.constant 0 : i32
    %c0_i32_0 = arith.constant 0 : i32
    %c0_i32_1 = arith.constant 0 : i32
    return %c0_i32, %c0_i32_0 : i32, i32
  }
  func.func @transform_4(%arg0: i32) -> (i32, i32) {
    %c0_i32 = arith.constant 0 : i32
    %c0_i32_0 = arith.constant 0 : i32
    %c0_i32_1 = arith.constant 0 : i32
    return %c0_i32, %c0_i32_0 : i32, i32
  }
  func.func @transform_5(%arg0: i32) -> (i32, i32) {
    %c0_i32 = arith.constant 0 : i32
    %c0_i32_0 = arith.constant 0 : i32
    %c0_i32_1 = arith.constant 0 : i32
    return %c0_i32, %c0_i32_0 : i32, i32
  }
  func.func @transform_6(%arg0: i32) -> (i32, i32) {
    %c0_i32 = arith.constant 0 : i32
    %c0_i32_0 = arith.constant 0 : i32
    %c0_i32_1 = arith.constant 0 : i32
    return %c0_i32, %c0_i32_0 : i32, i32
  }
  func.func @transform_7(%arg0: i32) -> (i32, i32) {
    %c0_i32 = arith.constant 0 : i32
    %c0_i32_0 = arith.constant 0 : i32
    return %arg0, %c0_i32 : i32, i32
  }
}

</mosaic_0001>

<llo_original>
// kernel: tpu_custom_call.1
$region0: #{tpu_custom_call.1}
  #allocation0 [shape = 'u32[]', space=smem, size = 0x4, offset = 0x4, fixed_abs, tag = 'smem constant byte address 0x4 - core index']
  #allocation1 [shape = 'u32[72,128]{1,0:T(1,128)}', space=vmem, size = 0x9000, scoped, tag = 'internal scratch']
  #allocation2 [shape = 'f32[24,128]{1,0:T(8,128)}', space=vmem, size = 0x3000, scoped, tag = 'scratch operand']
  #allocation3 [shape = 'f32[24,128]{1,0:T(8,128)}', space=vmem, size = 0x3000, scoped, tag = 'scratch operand']
  %s0 = inlined_call_operand.hbm [shape: f32[24,48], index: 0, kind: input, shape index: {}]
  %s1 = inlined_call_operand.hbm [shape: f32[48,128], index: 1, kind: input, shape index: {}]
  %s2 = inlined_call_operand.vmem [shape: f32[1,128], index: 2, kind: input, shape index: {}]
  %s3 = inlined_call_operand.hbm [shape: f32[128,128], index: 3, kind: input, shape index: {}]
  %s4 = inlined_call_operand.vmem [shape: f32[1,128], index: 4, kind: input, shape index: {}]
  %s5 = inlined_call_operand.hbm [shape: f32[128,128], index: 5, kind: input, shape index: {}]
  %s6 = inlined_call_operand.vmem [shape: f32[1,128], index: 6, kind: input, shape index: {}]
  %s7 = inlined_call_operand.hbm [shape: f32[24,128], index: 7, kind: output, shape index: {}]
  %s8 = sld [smem:[#allocation0]]
  $region54: #{tpu_custom_call.1} parent=0
    _
  %s10 = ssub.s32 1, %s8
  %s11 = scalar_select 0, %s10, %s8
  $region1: #{tpu_custom_call.1} parent=0
    #allocation4 [shape = 'u8[12288]{0}', space=vmem, size = 0x3000, scoped, tag = 'input window, operand 0, single buffered']
    #allocation5 [shape = 's32[1]{0}', space=sflag, size = 0x4, scoped, tag = 'scoped memory for tpu_custom_call.1']
    #allocation6 [shape = 's32[1]{0}', space=sflag, size = 0x4, scoped, tag = 'scoped memory for tpu_custom_call.1']
    #allocation7 [shape = 'u8[24576]{0}', space=vmem, size = 0x6000, scoped, tag = 'input window, operand 1, single buffered']
    #allocation8 [shape = 's32[1]{0}', space=sflag, size = 0x4, scoped, tag = 'scoped memory for tpu_custom_call.1']
    #allocation9 [shape = 'u8[65536]{0}', space=vmem, size = 0x10000, scoped, tag = 'input window, operand 3, single buffered']
    #allocation10 [shape = 'u8[65536]{0}', space=vmem, size = 0x10000, scoped, tag = 'input window, operand 5, single buffered']
    #allocation11 [shape = 's32[1]{0}', space=sflag, size = 0x4, scoped, tag = 'scoped memory for tpu_custom_call.1']
    #allocation12 [shape = 'u8[12288]{0}', space=vmem, size = 0x3000, scoped, tag = 'output window, operand 0, single buffered']
    %12 = vsyncpa [#allocation5], 0
    %13 = vsyncpa [#allocation8], 0
    %14 = vsyncpa [#allocation11], 0
    %15 = vsyncpa [#allocation6], 0
    // Predicated region
    $region2: #{tpu_custom_call.1} parent=1 // pred_check
      _
    $region3: #{tpu_custom_call.1} parent=1 // pred_check_branch
      %17 = sbr.rel (0) target = $region5
    $region4: #{tpu_custom_call.1} parent=1 // pred_region
      %19 = vsyncadd [#allocation5], 0
      %s20 = sshll.u32 %s0, 4
      %s21 = int_to_ptr.hbm [resolvable:$true] %s20
      %s22 = sshll.u32 [#allocation4], 4
      %s23 = int_to_ptr.vmem [resolvable:$true] %s22
      %28 = dma.hbm_to_vmem [thread:$0]  %s21, 384, %s23, [#allocation5], 128, 128, 8
    $region5: #{tpu_custom_call.1} parent=1 // pred_fallthru
      _
    // Predicated region
    $region6: #{tpu_custom_call.1} parent=1 // pred_check
      _
    $region7: #{tpu_custom_call.1} parent=1 // pred_check_branch
      %30 = sbr.rel (0) target = $region9
    $region8: #{tpu_custom_call.1} parent=1 // pred_region
      %32 = vsyncadd [#allocation8], 0
      %s33 = sshll.u32 %s1, 4
      %s34 = int_to_ptr.hbm [resolvable:$true] %s33
      %s35 = sshll.u32 [#allocation7], 4
      %s36 = int_to_ptr.vmem [resolvable:$true] %s35
      %41 = dma.hbm_to_vmem [thread:$0]  %s34, 768, %s36, [#allocation8], 128, 128, 8
    $region9: #{tpu_custom_call.1} parent=1 // pred_fallthru
      _
    // Predicated region
    $region10: #{tpu_custom_call.1} parent=1 // pred_check
      _
    $region11: #{tpu_custom_call.1} parent=1 // pred_check_branch
      %43 = sbr.rel (0) target = $region13
    $region12: #{tpu_custom_call.1} parent=1 // pred_region
      _
    $region13: #{tpu_custom_call.1} parent=1 // pred_fallthru
      _
    // Predicated region
    $region14: #{tpu_custom_call.1} parent=1 // pred_check
      _
    $region15: #{tpu_custom_call.1} parent=1 // pred_check_branch
      %45 = sbr.rel (0) target = $region17
    $region16: #{tpu_custom_call.1} parent=1 // pred_region
      %47 = vsyncadd [#allocation8], 0
      %s48 = sshll.u32 %s3, 4
      %s49 = int_to_ptr.hbm [resolvable:$true] %s48
      %s50 = sshll.u32 [#allocation9], 4
      %s51 = int_to_ptr.vmem [resolvable:$true] %s50
      %56 = dma.hbm_to_vmem [thread:$0]  %s49, 2048, %s51, [#allocation8], 128, 128, 8
    $region17: #{tpu_custom_call.1} parent=1 // pred_fallthru
      _
    // Predicated region
    $region18: #{tpu_custom_call.1} parent=1 // pred_check
      _
    $region19: #{tpu_custom_call.1} parent=1 // pred_check_branch
      %58 = sbr.rel (0) target = $region21
    $region20: #{tpu_custom_call.1} parent=1 // pred_region
      _
    $region21: #{tpu_custom_call.1} parent=1 // pred_fallthru
      _
    // Predicated region
    $region22: #{tpu_custom_call.1} parent=1 // pred_check
      _
    $region23: #{tpu_custom_call.1} parent=1 // pred_check_branch
      %60 = sbr.rel (0) target = $region25
    $region24: #{tpu_custom_call.1} parent=1 // pred_region
      %62 = vsyncadd [#allocation11], 0
      %s63 = sshll.u32 %s5, 4
      %s64 = int_to_ptr.hbm [resolvable:$true] %s63
      %s65 = sshll.u32 [#allocation10], 4
      %s66 = int_to_ptr.vmem [resolvable:$true] %s65
      %71 = dma.hbm_to_vmem [thread:$0]  %s64, 2048, %s66, [#allocation11], 128, 128, 8
    $region25: #{tpu_custom_call.1} parent=1 // pred_fallthru
      _
    // Predicated region
    $region26: #{tpu_custom_call.1} parent=1 // pred_check
      _
    $region27: #{tpu_custom_call.1} parent=1 // pred_check_branch
      %73 = sbr.rel (0) target = $region29
    $region28: #{tpu_custom_call.1} parent=1 // pred_region
      _
    $region29: #{tpu_custom_call.1} parent=1 // pred_fallthru
      _
    // Predicated region
    $region30: #{tpu_custom_call.1} parent=1 // pred_check
      _
    $region31: #{tpu_custom_call.1} parent=1 // pred_check_branch
      %75 = sbr.rel (0) target = $region33
    $region32: #{tpu_custom_call.1} parent=1 // pred_region
      %77 = dma.done [#allocation5], 384
    $region33: #{tpu_custom_call.1} parent=1 // pred_fallthru
      _
    // Predicated region
    $region34: #{tpu_custom_call.1} parent=1 // pred_check
      _
    $region35: #{tpu_custom_call.1} parent=1 // pred_check_branch
      %79 = sbr.rel (0) target = $region37
    $region36: #{tpu_custom_call.1} parent=1 // pred_region
      %81 = dma.done [#allocation8], 768
    $region37: #{tpu_custom_call.1} parent=1 // pred_fallthru
      _
    // Predicated region
    $region38: #{tpu_custom_call.1} parent=1 // pred_check
      _
    $region39: #{tpu_custom_call.1} parent=1 // pred_check_branch
      %83 = sbr.rel (0) target = $region41
    $region40: #{tpu_custom_call.1} parent=1 // pred_region
      %85 = dma.done [#allocation8], 2048
    $region41: #{tpu_custom_call.1} parent=1 // pred_fallthru
      _
    // Predicated region
    $region42: #{tpu_custom_call.1} parent=1 // pred_check
      _
    $region43: #{tpu_custom_call.1} parent=1 // pred_check_branch
      %87 = sbr.rel (0) target = $region45
    $region44: #{tpu_custom_call.1} parent=1 // pred_region
      %89 = dma.done [#allocation11], 2048
    $region45: #{tpu_custom_call.1} parent=1 // pred_fallthru
      _
    %v90 = vld [vmem:[#allocation4] sm:$0xff]
    %v91 = vld [vmem:[#allocation4 + $0x8] sm:$0xff]
    %v92 = vld [vmem:[#allocation4 + $0x10] sm:$0xff]
    %v93 = vld [vmem:[#allocation7] sm:$0xff]
    %v94 = vld [vmem:[#allocation7 + $0x8] sm:$0xff]
    %v95 = vld [vmem:[#allocation7 + $0x10] sm:$0xff]
    %v96 = vld [vmem:[#allocation7 + $0x18] sm:$0xff]
    %v97 = vld [vmem:[#allocation7 + $0x20] sm:$0xff]
    %v98 = vld [vmem:[#allocation7 + $0x28] sm:$0xff]
    %v99 = vld [vmem:[%s2] sm:$0x1]
    %v101 = vperm.slane %v99, 0
    %vm103 = vcmask 392192
    %v105 = vsel %vm103, %v90, 0
    %v108 = vsel %vm103, %v91, 0
    %v111 = vsel %vm103, %v92, 0
    %113 = vmatpush.msra.mxu0 0.0
    %114 = vmatpush.msra.mxu0 0.0
    %115 = vmatpush.msra.mxu0 0.0
    %116 = vmatpush.msra.mxu0 0.0
    %117 = vmatpush.msra.mxu0 0.0
    %118 = vmatpush.msra.mxu0 0.0
    %119 = vmatpush.msra.mxu0 0.0
    %120 = vmatpush.msra.mxu0 0.0
    %121 = vmatpush.msra.mxu0 0.0
    %122 = vmatpush.msra.mxu0 0.0
    %123 = vmatpush.msra.mxu0 %v98
    %124 = vmatpush.msra.mxu0 %v97
    %125 = vmatpush.msra.mxu0 %v96
    %126 = vmatpush.msra.mxu0 %v95
    %127 = vmatpush.msra.mxu0 %v94
    %128 = vmatpush.msra.mxu0 %v93
    %129 = vmatmul.f32.gmra.mxu0 %v105
    %v130 = vpop.f32.mrf.mxu0
    %v131 = vadd.f32 %v101, %v130
    %132 = vmatmul.f32.gmra.mxu0 %v108
    %v133 = vpop.f32.mrf.mxu0
    %v134 = vadd.f32 %v101, %v133
    %135 = vmatmul.f32.gmra.mxu0 %v111
    %v136 = vpop.f32.mrf.mxu0
    %v137 = vadd.f32 %v101, %v136
    %138 = vdwg.mxu0
    %v139 = vmax.f32 %v131, 0.0
    %v140 = vmax.f32 %v134, 0.0
    %v141 = vmax.f32 %v137, 0.0
    %142 = vst [vmem:[#allocation2] sm:$0xff] %v139
    %143 = vst [vmem:[#allocation2 + $0x8] sm:$0xff] %v140
    %144 = vst [vmem:[#allocation2 + $0x10] sm:$0xff] %v141
    %v145 = vld [vmem:[#allocation2] sm:$0xff]
    %v146 = vld [vmem:[#allocation2 + $0x8] sm:$0xff]
    %v147 = vld [vmem:[#allocation2 + $0x10] sm:$0xff]
    %v148 = vld [vmem:[#allocation9] sm:$0xff]
    %v149 = vld [vmem:[#allocation9 + $0x8] sm:$0xff]
    %v150 = vld [vmem:[#allocation9 + $0x10] sm:$0xff]
    %v151 = vld [vmem:[#allocation9 + $0x18] sm:$0xff]
    %v152 = vld [vmem:[#allocation9 + $0x20] sm:$0xff]
    %v153 = vld [vmem:[#allocation9 + $0x28] sm:$0xff]
    %v154 = vld [vmem:[#allocation9 + $0x30] sm:$0xff]
    %v155 = vld [vmem:[#allocation9 + $0x38] sm:$0xff]
    %v156 = vld [vmem:[#allocation9 + $0x40] sm:$0xff]
    %v157 = vld [vmem:[#allocation9 + $0x48] sm:$0xff]
    %v158 = vld [vmem:[#allocation9 + $0x50] sm:$0xff]
    %v159 = vld [vmem:[#allocation9 + $0x58] sm:$0xff]
    %v160 = vld [vmem:[#allocation9 + $0x60] sm:$0xff]
    %v161 = vld [vmem:[#allocation9 + $0x68] sm:$0xff]
    %v162 = vld [vmem:[#allocation9 + $0x70] sm:$0xff]
    %v163 = vld [vmem:[#allocation9 + $0x78] sm:$0xff]
    %v164 = vld [vmem:[%s4] sm:$0x1]
    %v166 = vperm.slane %v164, 0
    %168 = vmatpush.msra.mxu0 %v163
    %169 = vmatpush.msra.mxu0 %v162
    %170 = vmatpush.msra.mxu0 %v161
    %171 = vmatpush.msra.mxu0 %v160
    %172 = vmatpush.msra.mxu0 %v159
    %173 = vmatpush.msra.mxu0 %v158
    %174 = vmatpush.msra.mxu0 %v157
    %175 = vmatpush.msra.mxu0 %v156
    %176 = vmatpush.msra.mxu0 %v155
    %177 = vmatpush.msra.mxu0 %v154
    %178 = vmatpush.msra.mxu0 %v153
    %179 = vmatpush.msra.mxu0 %v152
    %180 = vmatpush.msra.mxu0 %v151
    %181 = vmatpush.msra.mxu0 %v150
    %182 = vmatpush.msra.mxu0 %v149
    %183 = vmatpush.msra.mxu0 %v148
    %184 = vmatmul.f32.gmra.mxu0 %v145
    %v185 = vpop.f32.mrf.mxu0
    %v186 = vadd.f32 %v166, %v185
    %187 = vmatmul.f32.gmra.mxu0 %v146
    %v188 = vpop.f32.mrf.mxu0
    %v189 = vadd.f32 %v166, %v188
    %190 = vmatmul.f32.gmra.mxu0 %v147
    %v191 = vpop.f32.mrf.mxu0
    %v192 = vadd.f32 %v166, %v191
    %193 = vdwg.mxu0
    %v194 = vmax.f32 %v186, 0.0
    %v195 = vmax.f32 %v189, 0.0
    %v196 = vmax.f32 %v192, 0.0
    %197 = vst [vmem:[#allocation3] sm:$0xff] %v194
    %198 = vst [vmem:[#allocation3 + $0x8] sm:$0xff] %v195
    %199 = vst [vmem:[#allocation3 + $0x10] sm:$0xff] %v196
    %v200 = vld [vmem:[#allocation3] sm:$0xff]
    %v201 = vld [vmem:[#allocation3 + $0x8] sm:$0xff]
    %v202 = vld [vmem:[#allocation3 + $0x10] sm:$0xff]
    %v203 = vld [vmem:[#allocation10] sm:$0xff]
    %v204 = vld [vmem:[#allocation10 + $0x8] sm:$0xff]
    %v205 = vld [vmem:[#allocation10 + $0x10] sm:$0xff]
    %v206 = vld [vmem:[#allocation10 + $0x18] sm:$0xff]
    %v207 = vld [vmem:[#allocation10 + $0x20] sm:$0xff]
    %v208 = vld [vmem:[#allocation10 + $0x28] sm:$0xff]
    %v209 = vld [vmem:[#allocation10 + $0x30] sm:$0xff]
    %v210 = vld [vmem:[#allocation10 + $0x38] sm:$0xff]
    %v211 = vld [vmem:[#allocation10 + $0x40] sm:$0xff]
    %v212 = vld [vmem:[#allocation10 + $0x48] sm:$0xff]
    %v213 = vld [vmem:[#allocation10 + $0x50] sm:$0xff]
    %v214 = vld [vmem:[#allocation10 + $0x58] sm:$0xff]
    %v215 = vld [vmem:[#allocation10 + $0x60] sm:$0xff]
    %v216 = vld [vmem:[#allocation10 + $0x68] sm:$0xff]
    %v217 = vld [vmem:[#allocation10 + $0x70] sm:$0xff]
    %v218 = vld [vmem:[#allocation10 + $0x78] sm:$0xff]
    %v219 = vld [vmem:[%s6] sm:$0x1]
    %v221 = vperm.slane %v219, 0
    %223 = vmatpush.msra.mxu0 %v218
    %224 = vmatpush.msra.mxu0 %v217
    %225 = vmatpush.msra.mxu0 %v216
    %226 = vmatpush.msra.mxu0 %v215
    %227 = vmatpush.msra.mxu0 %v214
    %228 = vmatpush.msra.mxu0 %v213
    %229 = vmatpush.msra.mxu0 %v212
    %230 = vmatpush.msra.mxu0 %v211
    %231 = vmatpush.msra.mxu0 %v210
    %232 = vmatpush.msra.mxu0 %v209
    %233 = vmatpush.msra.mxu0 %v208
    %234 = vmatpush.msra.mxu0 %v207
    %235 = vmatpush.msra.mxu0 %v206
    %236 = vmatpush.msra.mxu0 %v205
    %237 = vmatpush.msra.mxu0 %v204
    %238 = vmatpush.msra.mxu0 %v203
    %239 = vmatmul.f32.gmra.mxu0 %v200
    %v240 = vpop.f32.mrf.mxu0
    %v241 = vadd.f32 %v221, %v240
    %242 = vmatmul.f32.gmra.mxu0 %v201
    %v243 = vpop.f32.mrf.mxu0
    %v244 = vadd.f32 %v221, %v243
    %245 = vmatmul.f32.gmra.mxu0 %v202
    %v246 = vpop.f32.mrf.mxu0
    %v247 = vadd.f32 %v221, %v246
    %248 = vdwg.mxu0
    %249 = vst [vmem:[#allocation12] sm:$0xff] %v241
    %250 = vst [vmem:[#allocation12 + $0x8] sm:$0xff] %v244
    %251 = vst [vmem:[#allocation12 + $0x10] sm:$0xff] %v247
    // Predicated region
    $region46: #{tpu_custom_call.1} parent=1 // pred_check
      _
    $region47: #{tpu_custom_call.1} parent=1 // pred_check_branch
      %253 = sbr.rel (0) target = $region49
    $region48: #{tpu_custom_call.1} parent=1 // pred_region
      %255 = vsyncadd [#allocation6], 0
      %s256 = sshll.u32 [#allocation12], 4
      %s257 = int_to_ptr.vmem [resolvable:$true] %s256
      %s258 = sshll.u32 %s7, 4
      %s259 = int_to_ptr.hbm [resolvable:$true] %s258
      %264 = dma.vmem_to_hbm [thread:$0]  %s257, 384, %s259, [#allocation6], 128, 128, 8
    $region49: #{tpu_custom_call.1} parent=1 // pred_fallthru
      _
    // Predicated region
    $region50: #{tpu_custom_call.1} parent=1 // pred_check
      _
    $region51: #{tpu_custom_call.1} parent=1 // pred_check_branch
      %266 = sbr.rel (0) target = $region53
    $region52: #{tpu_custom_call.1} parent=1 // pred_region
      %268 = dma.done [#allocation6], 384
    $region53: #{tpu_custom_call.1} parent=1 // pred_fallthru
      _
    %269 = vsyncpa [#allocation5], 1
    %270 = vsyncpa [#allocation8], 1
    %271 = vsyncpa [#allocation11], 1
    %272 = vsyncpa [#allocation6], 1

// kernel: tpu_custom_call.1
$region0: #{tpu_custom_call.1}
  #allocation0 [shape = 'u32[]', space=smem, size = 0x4, offset = 0x4, fixed_abs, tag = 'smem constant byte address 0x4 - core index']
  #allocation1 [shape = 'u32[72,128]{1,0:T(1,128)}', space=vmem, size = 0x9000, scoped, tag = 'internal scratch']
  #allocation2 [shape = 'f32[24,128]{1,0:T(8,128)}', space=vmem, size = 0x3000, scoped, tag = 'scratch operand']
  #allocation3 [shape = 'f32[24,128]{1,0:T(8,128)}', space=vmem, size = 0x3000, scoped, tag = 'scratch operand']
  %s0 = inlined_call_operand.hbm [shape: f32[24,48], index: 0, kind: input, shape index: {}]
  %s1 = inlined_call_operand.hbm [shape: f32[48,128], index: 1, kind: input, shape index: {}]
  %s2 = inlined_call_operand.vmem [shape: f32[1,128], index: 2, kind: input, shape index: {}]
  %s3 = inlined_call_operand.hbm [shape: f32[128,128], index: 3, kind: input, shape index: {}]
  %s4 = inlined_call_operand.vmem [shape: f32[1,128], index: 4, kind: input, shape index: {}]
  %s5 = inlined_call_operand.hbm [shape: f32[128,128], index: 5, kind: input, shape index: {}]
  %s6 = inlined_call_operand.vmem [shape: f32[1,128], index: 6, kind: input, shape index: {}]
  %s7 = inlined_call_operand.hbm [shape: f32[24,128], index: 7, kind: output, shape index: {}]
  %s8 = sld [smem:[#allocation0]]
  $region54: #{tpu_custom_call.1} parent=0
    _
  %s10 = ssub.s32 1, %s8
  %s11 = scalar_select 0, %s10, %s8
  $region1: #{tpu_custom_call.1} parent=0
    #allocation4 [shape = 'u8[12288]{0}', space=vmem, size = 0x3000, scoped, tag = 'input window, operand 0, single buffered']
    #allocation5 [shape = 's32[1]{0}', space=sflag, size = 0x4, scoped, tag = 'scoped memory for tpu_custom_call.1']
    #allocation6 [shape = 's32[1]{0}', space=sflag, size = 0x4, scoped, tag = 'scoped memory for tpu_custom_call.1']
    #allocation7 [shape = 'u8[24576]{0}', space=vmem, size = 0x6000, scoped, tag = 'input window, operand 1, single buffered']
    #allocation8 [shape = 's32[1]{0}', space=sflag, size = 0x4, scoped, tag = 'scoped memory for tpu_custom_call.1']
    #allocation9 [shape = 'u8[65536]{0}', space=vmem, size = 0x10000, scoped, tag = 'input window, operand 3, single buffered']
    #allocation10 [shape = 'u8[65536]{0}', space=vmem, size = 0x10000, scoped, tag = 'input window, operand 5, single buffered']
    #allocation11 [shape = 's32[1]{0}', space=sflag, size = 0x4, scoped, tag = 'scoped memory for tpu_custom_call.1']
    #allocation12 [shape = 'u8[12288]{0}', space=vmem, size = 0x3000, scoped, tag = 'output window, operand 0, single buffered']
    %12 = vsyncpa [#allocation5], 0
    %13 = vsyncpa [#allocation8], 0
    %14 = vsyncpa [#allocation11], 0
    %15 = vsyncpa [#allocation6], 0
    // Predicated region
    $region2: #{tpu_custom_call.1} parent=1 // pred_check
      _
    $region3: #{tpu_custom_call.1} parent=1 // pred_check_branch
      %17 = sbr.rel (0) target = $region5
    $region4: #{tpu_custom_call.1} parent=1 // pred_region
      %19 = vsyncadd [#allocation5], 0
      %s20 = sshll.u32 %s0, 4
      %s21 = int_to_ptr.hbm [resolvable:$true] %s20
      %s22 = sshll.u32 [#allocation4], 4
      %s23 = int_to_ptr.vmem [resolvable:$true] %s22
      %28 = dma.hbm_to_vmem [thread:$0]  %s21, 384, %s23, [#allocation5], 128, 128, 8
    $region5: #{tpu_custom_call.1} parent=1 // pred_fallthru
      _
    // Predicated region
    $region6: #{tpu_custom_call.1} parent=1 // pred_check
      _
    $region7: #{tpu_custom_call.1} parent=1 // pred_check_branch
      %30 = sbr.rel (0) target = $region9
    $region8: #{tpu_custom_call.1} parent=1 // pred_region
      %32 = vsyncadd [#allocation8], 0
      %s33 = sshll.u32 %s1, 4
      %s34 = int_to_ptr.hbm [resolvable:$true] %s33
      %s35 = sshll.u32 [#allocation7], 4
      %s36 = int_to_ptr.vmem [resolvable:$true] %s35
      %41 = dma.hbm_to_vmem [thread:$0]  %s34, 768, %s36, [#allocation8], 128, 128, 8
    $region9: #{tpu_custom_call.1} parent=1 // pred_fallthru
      _
    // Predicated region
    $region10: #{tpu_custom_call.1} parent=1 // pred_check
      _
    $region11: #{tpu_custom_call.1} parent=1 // pred_check_branch
      %43 = sbr.rel (0) target = $region13
    $region12: #{tpu_custom_call.1} parent=1 // pred_region
      _
    $region13: #{tpu_custom_call.1} parent=1 // pred_fallthru
      _
    // Predicated region
    $region14: #{tpu_custom_call.1} parent=1 // pred_check
      _
    $region15: #{tpu_custom_call.1} parent=1 // pred_check_branch
      %45 = sbr.rel (0) target = $region17
    $region16: #{tpu_custom_call.1} parent=1 // pred_region
      %47 = vsyncadd [#allocation8], 0
      %s48 = sshll.u32 %s3, 4
      %s49 = int_to_ptr.hbm [resolvable:$true] %s48
      %s50 = sshll.u32 [#allocation9], 4
      %s51 = int_to_ptr.vmem [resolvable:$true] %s50
      %56 = dma.hbm_to_vmem [thread:$0]  %s49, 2048, %s51, [#allocation8], 128, 128, 8
    $region17: #{tpu_custom_call.1} parent=1 // pred_fallthru
      _
    // Predicated region
    $region18: #{tpu_custom_call.1} parent=1 // pred_check
      _
    $region19: #{tpu_custom_call.1} parent=1 // pred_check_branch
      %58 = sbr.rel (0) target = $region21
    $region20: #{tpu_custom_call.1} parent=1 // pred_region
      _
    $region21: #{tpu_custom_call.1} parent=1 // pred_fallthru
      _
    // Predicated region
    $region22: #{tpu_custom_call.1} parent=1 // pred_check
      _
    $region23: #{tpu_custom_call.1} parent=1 // pred_check_branch
      %60 = sbr.rel (0) target = $region25
    $region24: #{tpu_custom_call.1} parent=1 // pred_region
      %62 = vsyncadd [#allocation11], 0
      %s63 = sshll.u32 %s5, 4
      %s64 = int_to_ptr.hbm [resolvable:$true] %s63
      %s65 = sshll.u32 [#allocation10], 4
      %s66 = int_to_ptr.vmem [resolvable:$true] %s65
      %71 = dma.hbm_to_vmem [thread:$0]  %s64, 2048, %s66, [#allocation11], 128, 128, 8
    $region25: #{tpu_custom_call.1} parent=1 // pred_fallthru
      _
    // Predicated region
    $region26: #{tpu_custom_call.1} parent=1 // pred_check
      _
    $region27: #{tpu_custom_call.1} parent=1 // pred_check_branch
      %73 = sbr.rel (0) target = $region29
    $region28: #{tpu_custom_call.1} parent=1 // pred_region
      _
    $region29: #{tpu_custom_call.1} parent=1 // pred_fallthru
      _
    // Predicated region
    $region30: #{tpu_custom_call.1} parent=1 // pred_check
      _
    $region31: #{tpu_custom_call.1} parent=1 // pred_check_branch
      %75 = sbr.rel (0) target = $region33
    $region32: #{tpu_custom_call.1} parent=1 // pred_region
      %77 = dma.done [#allocation5], 384
    $region33: #{tpu_custom_call.1} parent=1 // pred_fallthru
      _
    // Predicated region
    $region34: #{tpu_custom_call.1} parent=1 // pred_check
      _
    $region35: #{tpu_custom_call.1} parent=1 // pred_check_branch
      %79 = sbr.rel (0) target = $region37
    $region36: #{tpu_custom_call.1} parent=1 // pred_region
      %81 = dma.done [#allocation8], 768
    $region37: #{tpu_custom_call.1} parent=1 // pred_fallthru
      _
    // Predicated region
    $region38: #{tpu_custom_call.1} parent=1 // pred_check
      _
    $region39: #{tpu_custom_call.1} parent=1 // pred_check_branch
      %83 = sbr.rel (0) target = $region41
    $region40: #{tpu_custom_call.1} parent=1 // pred_region
      %85 = dma.done [#allocation8], 2048
    $region41: #{tpu_custom_call.1} parent=1 // pred_fallthru
      _
    // Predicated region
    $region42: #{tpu_custom_call.1} parent=1 // pred_check
      _
    $region43: #{tpu_custom_call.1} parent=1 // pred_check_branch
      %87 = sbr.rel (0) target = $region45
    $region44: #{tpu_custom_call.1} parent=1 // pred_region
      %89 = dma.done [#allocation11], 2048
    $region45: #{tpu_custom_call.1} parent=1 // pred_fallthru
      _
    %v90 = vld [vmem:[#allocation4] sm:$0xff]
    %v91 = vld [vmem:[#allocation4 + $0x8] sm:$0xff]
    %v92 = vld [vmem:[#allocation4 + $0x10] sm:$0xff]
    %v93 = vld [vmem:[#allocation7] sm:$0xff]
    %v94 = vld [vmem:[#allocation7 + $0x8] sm:$0xff]
    %v95 = vld [vmem:[#allocation7 + $0x10] sm:$0xff]
    %v96 = vld [vmem:[#allocation7 + $0x18] sm:$0xff]
    %v97 = vld [vmem:[#allocation7 + $0x20] sm:$0xff]
    %v98 = vld [vmem:[#allocation7 + $0x28] sm:$0xff]
    %v99 = vld [vmem:[%s2] sm:$0x1]
    %v101 = vperm.slane %v99, 0
    %vm103 = vcmask 392192
    %v105 = vsel %vm103, %v90, 0
    %v108 = vsel %vm103, %v91, 0
    %v111 = vsel %vm103, %v92, 0
    %113 = vmatpush.msra.mxu0 0.0
    %114 = vmatpush.msra.mxu0 0.0
    %115 = vmatpush.msra.mxu0 0.0
    %116 = vmatpush.msra.mxu0 0.0
    %117 = vmatpush.msra.mxu0 0.0
    %118 = vmatpush.msra.mxu0 0.0
    %119 = vmatpush.msra.mxu0 0.0
    %120 = vmatpush.msra.mxu0 0.0
    %121 = vmatpush.msra.mxu0 0.0
    %122 = vmatpush.msra.mxu0 0.0
    %123 = vmatpush.msra.mxu0 %v98
    %124 = vmatpush.msra.mxu0 %v97
    %125 = vmatpush.msra.mxu0 %v96
    %126 = vmatpush.msra.mxu0 %v95
    %127 = vmatpush.msra.mxu0 %v94
    %128 = vmatpush.msra.mxu0 %v93
    %129 = vmatmul.f32.gmra.mxu0 %v105
    %v130 = vpop.f32.mrf.mxu0
    %v131 = vadd.f32 %v101, %v130
    %132 = vmatmul.f32.gmra.mxu0 %v108
    %v133 = vpop.f32.mrf.mxu0
    %v134 = vadd.f32 %v101, %v133
    %135 = vmatmul.f32.gmra.mxu0 %v111
    %v136 = vpop.f32.mrf.mxu0
    %v137 = vadd.f32 %v101, %v136
    %138 = vdwg.mxu0
    %v139 = vmax.f32 %v131, 0.0
    %v140 = vmax.f32 %v134, 0.0
    %v141 = vmax.f32 %v137, 0.0
    %142 = vst [vmem:[#allocation2] sm:$0xff] %v139
    %143 = vst [vmem:[#allocation2 + $0x8] sm:$0xff] %v140
    %144 = vst [vmem:[#allocation2 + $0x10] sm:$0xff] %v141
    %v145 = vld [vmem:[#allocation2] sm:$0xff]
    %v146 = vld [vmem:[#allocation2 + $0x8] sm:$0xff]
    %v147 = vld [vmem:[#allocation2 + $0x10] sm:$0xff]
    %v148 = vld [vmem:[#allocation9] sm:$0xff]
    %v149 = vld [vmem:[#allocation9 + $0x8] sm:$0xff]
    %v150 = vld [vmem:[#allocation9 + $0x10] sm:$0xff]
    %v151 = vld [vmem:[#allocation9 + $0x18] sm:$0xff]
    %v152 = vld [vmem:[#allocation9 + $0x20] sm:$0xff]
    %v153 = vld [vmem:[#allocation9 + $0x28] sm:$0xff]
    %v154 = vld [vmem:[#allocation9 + $0x30] sm:$0xff]
    %v155 = vld [vmem:[#allocation9 + $0x38] sm:$0xff]
    %v156 = vld [vmem:[#allocation9 + $0x40] sm:$0xff]
    %v157 = vld [vmem:[#allocation9 + $0x48] sm:$0xff]
    %v158 = vld [vmem:[#allocation9 + $0x50] sm:$0xff]
    %v159 = vld [vmem:[#allocation9 + $0x58] sm:$0xff]
    %v160 = vld [vmem:[#allocation9 + $0x60] sm:$0xff]
    %v161 = vld [vmem:[#allocation9 + $0x68] sm:$0xff]
    %v162 = vld [vmem:[#allocation9 + $0x70] sm:$0xff]
    %v163 = vld [vmem:[#allocation9 + $0x78] sm:$0xff]
    %v164 = vld [vmem:[%s4] sm:$0x1]
    %v166 = vperm.slane %v164, 0
    %168 = vmatpush.msra.mxu0 %v163
    %169 = vmatpush.msra.mxu0 %v162
    %170 = vmatpush.msra.mxu0 %v161
    %171 = vmatpush.msra.mxu0 %v160
    %172 = vmatpush.msra.mxu0 %v159
    %173 = vmatpush.msra.mxu0 %v158
    %174 = vmatpush.msra.mxu0 %v157
    %175 = vmatpush.msra.mxu0 %v156
    %176 = vmatpush.msra.mxu0 %v155
    %177 = vmatpush.msra.mxu0 %v154
    %178 = vmatpush.msra.mxu0 %v153
    %179 = vmatpush.msra.mxu0 %v152
    %180 = vmatpush.msra.mxu0 %v151
    %181 = vmatpush.msra.mxu0 %v150
    %182 = vmatpush.msra.mxu0 %v149
    %183 = vmatpush.msra.mxu0 %v148
    %184 = vmatmul.f32.gmra.mxu0 %v145
    %v185 = vpop.f32.mrf.mxu0
    %v186 = vadd.f32 %v166, %v185
    %187 = vmatmul.f32.gmra.mxu0 %v146
    %v188 = vpop.f32.mrf.mxu0
    %v189 = vadd.f32 %v166, %v188
    %190 = vmatmul.f32.gmra.mxu0 %v147
    %v191 = vpop.f32.mrf.mxu0
    %v192 = vadd.f32 %v166, %v191
    %193 = vdwg.mxu0
    %v194 = vmax.f32 %v186, 0.0
    %v195 = vmax.f32 %v189, 0.0
    %v196 = vmax.f32 %v192, 0.0
    %197 = vst [vmem:[#allocation3] sm:$0xff] %v194
    %198 = vst [vmem:[#allocation3 + $0x8] sm:$0xff] %v195
    %199 = vst [vmem:[#allocation3 + $0x10] sm:$0xff] %v196
    %v200 = vld [vmem:[#allocation3] sm:$0xff]
    %v201 = vld [vmem:[#allocation3 + $0x8] sm:$0xff]
    %v202 = vld [vmem:[#allocation3 + $0x10] sm:$0xff]
    %v203 = vld [vmem:[#allocation10] sm:$0xff]
    %v204 = vld [vmem:[#allocation10 + $0x8] sm:$0xff]
    %v205 = vld [vmem:[#allocation10 + $0x10] sm:$0xff]
    %v206 = vld [vmem:[#allocation10 + $0x18] sm:$0xff]
    %v207 = vld [vmem:[#allocation10 + $0x20] sm:$0xff]
    %v208 = vld [vmem:[#allocation10 + $0x28] sm:$0xff]
    %v209 = vld [vmem:[#allocation10 + $0x30] sm:$0xff]
    %v210 = vld [vmem:[#allocation10 + $0x38] sm:$0xff]
    %v211 = vld [vmem:[#allocation10 + $0x40] sm:$0xff]
    %v212 = vld [vmem:[#allocation10 + $0x48] sm:$0xff]
    %v213 = vld [vmem:[#allocation10 + $0x50] sm:$0xff]
    %v214 = vld [vmem:[#allocation10 + $0x58] sm:$0xff]
    %v215 = vld [vmem:[#allocation10 + $0x60] sm:$0xff]
    %v216 = vld [vmem:[#allocation10 + $0x68] sm:$0xff]
    %v217 = vld [vmem:[#allocation10 + $0x70] sm:$0xff]
    %v218 = vld [vmem:[#allocation10 + $0x78] sm:$0xff]
    %v219 = vld [vmem:[%s6] sm:$0x1]
    %v221 = vperm.slane %v219, 0
    %223 = vmatpush.msra.mxu0 %v218
    %224 = vmatpush.msra.mxu0 %v217
    %225 = vmatpush.msra.mxu0 %v216
    %226 = vmatpush.msra.mxu0 %v215
    %227 = vmatpush.msra.mxu0 %v214
    %228 = vmatpush.msra.mxu0 %v213
    %229 = vmatpush.msra.mxu0 %v212
    %230 = vmatpush.msra.mxu0 %v211
    %231 = vmatpush.msra.mxu0 %v210
    %232 = vmatpush.msra.mxu0 %v209
    %233 = vmatpush.msra.mxu0 %v208
    %234 = vmatpush.msra.mxu0 %v207
    %235 = vmatpush.msra.mxu0 %v206
    %236 = vmatpush.msra.mxu0 %v205
    %237 = vmatpush.msra.mxu0 %v204
    %238 = vmatpush.msra.mxu0 %v203
    %239 = vmatmul.f32.gmra.mxu0 %v200
    %v240 = vpop.f32.mrf.mxu0
    %v241 = vadd.f32 %v221, %v240
    %242 = vmatmul.f32.gmra.mxu0 %v201
    %v243 = vpop.f32.mrf.mxu0
    %v244 = vadd.f32 %v221, %v243
    %245 = vmatmul.f32.gmra.mxu0 %v202
    %v246 = vpop.f32.mrf.mxu0
    %v247 = vadd.f32 %v221, %v246
    %248 = vdwg.mxu0
    %249 = vst [vmem:[#allocation12] sm:$0xff] %v241
    %250 = vst [vmem:[#allocation12 + $0x8] sm:$0xff] %v244
    %251 = vst [vmem:[#allocation12 + $0x10] sm:$0xff] %v247
    // Predicated region
    $region46: #{tpu_custom_call.1} parent=1 // pred_check
      _
    $region47: #{tpu_custom_call.1} parent=1 // pred_check_branch
      %253 = sbr.rel (0) target = $region49
    $region48: #{tpu_custom_call.1} parent=1 // pred_region
      %255 = vsyncadd [#allocation6], 0
      %s256 = sshll.u32 [#allocation12], 4
      %s257 = int_to_ptr.vmem [resolvable:$true] %s256
      %s258 = sshll.u32 %s7, 4
      %s259 = int_to_ptr.hbm [resolvable:$true] %s258
      %264 = dma.vmem_to_hbm [thread:$0]  %s257, 384, %s259, [#allocation6], 128, 128, 8
    $region49: #{tpu_custom_call.1} parent=1 // pred_fallthru
      _
    // Predicated region
    $region50: #{tpu_custom_call.1} parent=1 // pred_check
      _
    $region51: #{tpu_custom_call.1} parent=1 // pred_check_branch
      %266 = sbr.rel (0) target = $region53
    $region52: #{tpu_custom_call.1} parent=1 // pred_region
      %268 = dma.done [#allocation6], 384
    $region53: #{tpu_custom_call.1} parent=1 // pred_fallthru
      _
    %269 = vsyncpa [#allocation5], 1
    %270 = vsyncpa [#allocation8], 1
    %271 = vsyncpa [#allocation11], 1
    %272 = vsyncpa [#allocation6], 1

</llo_original>
